<compile_context>
chip_gen: v7x
topology: tpu7x:2x2x1
jax: 0.10.0
libtpu: 0.0.40
codegen_flags: <defaults>
</compile_context>

<pallas_src>
import jax
import jax.numpy as jnp
from jax.experimental import pallas as pl
from jax.experimental.pallas import tpu as pltpu


def _round_up(x, m):
    return (x + m - 1) // m * m


# ---------------------------------------------------------------------------
# Kernel factory: specialized on (has_kappa1, has_kappa2, matmul dtype)
# ---------------------------------------------------------------------------
def _make_kernel(has_k1, has_k2, dot_dtype):
    """Ref order: o, o_next, [kappa1], [kappa2], WA, WC, WD, WB, W_heads,
    b_heads, out.  Matmuls accumulate in f32; all elementwise math stays f32
    (v5e has no bf16 VPU)."""

    def to_dot(x):
        return x if dot_dtype == jnp.float32 else x.astype(dot_dtype)

    def kernel(*refs):
        it = iter(refs)
        o_ref = next(it)
        on_ref = next(it)
        k1_ref = next(it) if has_k1 else None
        k2_ref = next(it) if has_k2 else None
        wa_ref, wc_ref, wd_ref, wb_ref, wh_ref, bh_ref, out_ref = it

        o = o_ref[...]                                        # [tb, d_o] f32
        o_next = on_ref[...]                                  # [tb, d_o] f32

        # z = C(o + k1) + D(o_next + k1): two accumulating dots, no concat.
        if has_k1:
            k1 = k1_ref[...]
            lhs_c, lhs_d = o + k1, o_next + k1
        else:
            lhs_c, lhs_d = o, o_next
        z = (jnp.dot(to_dot(lhs_c), wc_ref[...],
                     preferred_element_type=jnp.float32)
             + jnp.dot(to_dot(lhs_d), wd_ref[...],
                       preferred_element_type=jnp.float32))

        # obs_pred = A(o + k2) + B(z) - k2: again two dots, no lane relayout.
        if has_k2:
            k2 = k2_ref[...]
            obs_pred = (jnp.dot(to_dot(o + k2), wa_ref[...],
                                preferred_element_type=jnp.float32)
                        + jnp.dot(to_dot(z), wb_ref[...],
                                  preferred_element_type=jnp.float32)
                        - k2)
        else:
            obs_pred = (jnp.dot(to_dot(o), wa_ref[...],
                                preferred_element_type=jnp.float32)
                        + jnp.dot(to_dot(z), wb_ref[...],
                                  preferred_element_type=jnp.float32))

        delta = obs_pred - o
        # [action | observation | noise | 0-pad]: one fused lane-padded matmul.
        heads = (jnp.dot(to_dot(delta), wh_ref[...],
                         preferred_element_type=jnp.float32)
                 + bh_ref[...])

        # Single lane-dense (multiple-of-128-wide) unmasked store.
        out_ref[...] = jnp.concatenate([obs_pred, heads], axis=-1)

    return kernel


# ---------------------------------------------------------------------------
# Host-side weight packing (do once; reuse across forward calls)
# ---------------------------------------------------------------------------
def fuse_params(params, weights_dtype=jnp.float32):
    """Pack head weights into one lane-padded slab; optionally cast matmul
    weights to bf16 (biases / elementwise stay f32)."""
    WA, WC, WD, WB, Wact, bact, Wobs, bobs, Wnoi, bnoi = params
    d_o = WA.shape[0]
    d_z = WC.shape[1]
    d_a = Wact.shape[1]
    d_b = Wnoi.shape[1]
    d_h = d_a + d_o + d_b
    out_w = _round_up(d_o + d_h, 128)          # lane-dense output slab width
    heads_w = out_w - d_o

    W_heads = jnp.concatenate([Wact, Wobs, Wnoi], axis=1)     # [d_o, d_h]
    b_heads = jnp.concatenate([bact, bobs, bnoi], axis=1)     # [1, d_h]
    W_heads = jnp.pad(W_heads, ((0, 0), (0, heads_w - d_h)))  # zero-pad lanes
    b_heads = jnp.pad(b_heads, ((0, 0), (0, heads_w - d_h)))

    wd = weights_dtype
    fused = (WA.astype(wd), WC.astype(wd), WD.astype(wd), WB.astype(wd),
             W_heads.astype(wd), b_heads.astype(jnp.float32))
    dims = dict(d_o=d_o, d_z=d_z, d_a=d_a, d_b=d_b,
                out_w=out_w, heads_w=heads_w)
    return fused, dims


# ---------------------------------------------------------------------------
# Forward wrapper
# ---------------------------------------------------------------------------
def lam_linear_forward(o, o_next, fused, dims, kappa1=None, kappa2=None,
                       block_b=1024, unpack=True):
    """Pallas implementation of LAM_Linear.forward (pseudo_latent=True)."""
    B, d_o = o.shape
    d_a, d_b = dims["d_a"], dims["d_b"]
    out_w = dims["out_w"]
    WA, WC, WD, WB, W_heads, b_heads = fused
    dot_dtype = WA.dtype

    # Batch tiling:
    #  * tiny batches: one step, block == full array (no padding copies at all)
    #  * larger batches: multiple-of-8 tiles and >=2 grid steps so both v7x
    #    TensorCores get work; a partial last tile is handled by Pallas block
    #    masking (rows are independent), so no wrapper-side jnp.pad is needed.
    b8 = _round_up(B, 8)
    if b8 < 64:
        tb = B
        grid = 1
    else:
        tb = max(8, min(block_b, _round_up(pl.cdiv(b8, 2), 8)))
        grid = pl.cdiv(B, tb)
    rows_out = tb * grid

    def row_spec():
        return pl.BlockSpec((tb, d_o), lambda i: (i, 0))

    def full_spec(a):
        # Constant index_map: weight slabs stay resident in VMEM across steps.
        # TODO(synk): for very large d_o mark these pipeline_mode=pl.Buffered(1)
        # (or N-tile W_heads) so resident weights fit v7x's 64 MiB VMEM.
        return pl.BlockSpec(a.shape, lambda i: (0, 0))

    has_k1 = kappa1 is not None
    has_k2 = kappa2 is not None

    act_inputs = [o, o_next]
    if has_k1:
        act_inputs.append(kappa1)
    if has_k2:
        act_inputs.append(kappa2)
    act_specs = [row_spec() for _ in act_inputs]

    weight_inputs = [WA, WC, WD, WB, W_heads, b_heads]
    weight_specs = [full_spec(w) for w in weight_inputs]

    kernel = _make_kernel(has_k1, has_k2, dot_dtype)

    # Explicit VMEM budget: resident weights (x2 safety) + 3x margin on the
    # double-buffered activation / output tiles, clamped to [32, 64] MiB so it
    # stays within v7x physical VMEM while raising v5e's 16 MiB scoped default.
    weight_bytes = sum(int(w.size) * w.dtype.itemsize for w in weight_inputs)
    tile_bytes = tb * 4 * (len(act_inputs) * d_o + out_w)
    budget = 2 * weight_bytes + 3 * tile_bytes + (4 << 20)
    vmem_limit = int(min(max(budget, 32 << 20), 64 << 20))

    out = pl.pallas_call(
        kernel,
        out_shape=jax.ShapeDtypeStruct((rows_out, out_w), jnp.float32),
        grid_spec=pltpu.PrefetchScalarGridSpec(
            num_scalar_prefetch=0,
            grid=(grid,),
            in_specs=act_specs + weight_specs,
            out_specs=pl.BlockSpec((tb, out_w), lambda i: (i, 0)),
        ),
        compiler_params=pltpu.CompilerParams(
            dimension_semantics=("parallel",),
            vmem_limit_bytes=vmem_limit),
    )(*act_inputs, *weight_inputs)

    if not unpack:
        # Packed lane-dense slab [obs_pred | action | observation | noise | 0]:
        # lets a downstream fused kernel consume it without extra HBM passes.
        return out[:B]

    obs_pred = out[:B, :d_o]
    action = out[:B, d_o:d_o + d_a]
    observation = out[:B, d_o + d_a:2 * d_o + d_a]
    noise = out[:B, 2 * d_o + d_a:2 * d_o + d_a + d_b]
    return obs_pred, action, observation, noise


# ---------------------------------------------------------------------------
# Deterministic parameter init (PyTorch nn.Linear-style), stored as [in, out]
# ---------------------------------------------------------------------------
def init_params(key, d_o, d_z, d_a, d_b):
    ks = jax.random.split(key, 10)

    def lin_w(k, d_in, d_out):
        bound = 1.0 / jnp.sqrt(d_in)
        return jax.random.uniform(k, (d_in, d_out), jnp.float32, -bound, bound)

    def lin_b(k, d_in, d_out):
        bound = 1.0 / jnp.sqrt(d_in)
        return jax.random.uniform(k, (1, d_out), jnp.float32, -bound, bound)

    WA = lin_w(ks[0], d_o, d_o)          # A: d_o -> d_o, no bias
    WC = lin_w(ks[1], d_o, d_z)          # C: d_o -> d_z, no bias
    WD = lin_w(ks[2], d_o, d_z)          # D: d_o -> d_z, no bias
    WB = lin_w(ks[3], d_z, d_o)          # B: d_z -> d_o, no bias
    Wact = lin_w(ks[4], d_o, d_a)        # action_pred (pseudo_latent)
    bact = lin_b(ks[5], d_o, d_a)
    Wobs = lin_w(ks[6], d_o, d_o)        # observation_pred
    bobs = lin_b(ks[7], d_o, d_o)
    Wnoi = lin_w(ks[8], d_o, d_b)        # noise_pred
    bnoi = lin_b(ks[9], d_o, d_b)
    return (WA, WC, WD, WB, Wact, bact, Wobs, bobs, Wnoi, bnoi)


def lam_linear_ref(o, o_next, params, kappa1=None, kappa2=None):
    """Pure-JAX reference (unfused) for validation."""
    if kappa1 is None:
        kappa1 = jnp.zeros_like(o)
    if kappa2 is None:
        kappa2 = jnp.zeros_like(o)
    WA, WC, WD, WB, Wact, bact, Wobs, bobs, Wnoi, bnoi = params
    z = (o + kappa1) @ WC + (o_next + kappa1) @ WD
    obs_pred = (o + kappa2) @ WA + z @ WB - kappa2
    delta = obs_pred - o
    return (
        obs_pred,
        delta @ Wact + bact,
        delta @ Wobs + bobs,
        delta @ Wnoi + bnoi,
    )


if __name__ == "__main__":
    # Small shapes consistent with the module's forward: o, o_next are [B, d_o].
    B, d_o, d_z, d_a, d_b = 8, 32, 16, 8, 4

    key = jax.random.PRNGKey(0)
    k_o, k_on, k_k1, k_k2, k_params = jax.random.split(key, 5)
    o = jax.random.normal(k_o, (B, d_o), jnp.float32)
    o_next = jax.random.normal(k_on, (B, d_o), jnp.float32)
    params = init_params(k_params, d_o, d_z, d_a, d_b)

    fused, dims = fuse_params(params)                       # f32 weights

    # Default path (kappa1 = kappa2 = None -> no kappa DMAs at all).
    outs = jax.block_until_ready(lam_linear_forward(o, o_next, fused, dims))
    refs = lam_linear_ref(o, o_next, params)
    for got, want in zip(outs, refs):
        assert got.shape == want.shape and got.dtype == want.dtype
        assert jnp.allclose(got, want, atol=1e-5, rtol=1e-5)

    # Explicit kappa1 and kappa2.
    kappa1 = 0.1 * jax.random.normal(k_k1, (B, d_o), jnp.float32)
    kappa2 = 0.1 * jax.random.normal(k_k2, (B, d_o), jnp.float32)
    outs_k = jax.block_until_ready(
        lam_linear_forward(o, o_next, fused, dims, kappa1, kappa2))
    refs_k = lam_linear_ref(o, o_next, params, kappa1, kappa2)
    for got, want in zip(outs_k, refs_k):
        assert got.shape == want.shape and got.dtype == want.dtype
        assert jnp.allclose(got, want, atol=1e-5, rtol=1e-5)

    # Only kappa1 supplied: specialized kernel, no all-zero kappa2 DMA.
    outs_k1 = jax.block_until_ready(
        lam_linear_forward(o, o_next, fused, dims, kappa1=kappa1))
    refs_k1 = lam_linear_ref(o, o_next, params, kappa1=kappa1)
    for got, want in zip(outs_k1, refs_k1):
        assert jnp.allclose(got, want, atol=1e-5, rtol=1e-5)

    # bf16 weights / dot operands (bandwidth-bound v6e/v7x deployments),
    # f32 accumulation and f32 elementwise math; loosened tolerance.
    fused_bf, dims_bf = fuse_params(params, weights_dtype=jnp.bfloat16)
    outs_bf = jax.block_until_ready(
        lam_linear_forward(o, o_next, fused_bf, dims_bf, kappa1, kappa2))
    for got, want in zip(outs_bf, refs_k):
        assert got.shape == want.shape
        assert jnp.allclose(got, want, atol=2e-1, rtol=5e-2)

    print("KERNEL_OK")
</pallas_src>

<mosaic_0001>
module attributes {stable_mosaic.version = 11 : i64} {
  func.func @kernel(%arg0: i32, %arg1: memref<8x32xf32, #tpu.memory_space<vmem>>, %arg2: memref<8x32xf32, #tpu.memory_space<vmem>>, %arg3: memref<32x32xf32, #tpu.memory_space<vmem>>, %arg4: memref<32x16xf32, #tpu.memory_space<vmem>>, %arg5: memref<32x16xf32, #tpu.memory_space<vmem>>, %arg6: memref<16x32xf32, #tpu.memory_space<vmem>>, %arg7: memref<32x96xf32, #tpu.memory_space<vmem>>, %arg8: memref<1x96xf32, #tpu.memory_space<vmem>>, %arg9: memref<8x128xf32, #tpu.memory_space<vmem>>) attributes {dimension_semantics = [#tpu.dimension_semantics<parallel>], iteration_bounds = array<i64: 1>, scalar_prefetch = 0 : i64, scratch_operands = 0 : i64, tpu.core_type = #tpu.core_type<tc>, window_params = [{transform_indices = @transform_0, window_bounds = array<i64: 8, 32>}, {transform_indices = @transform_1, window_bounds = array<i64: 8, 32>}, {pipeline_mode = #tpu.pipeline_mode<synchronous>, transform_indices = @transform_2, window_bounds = array<i64: 32, 32>}, {pipeline_mode = #tpu.pipeline_mode<synchronous>, transform_indices = @transform_3, window_bounds = array<i64: 32, 16>}, {pipeline_mode = #tpu.pipeline_mode<synchronous>, transform_indices = @transform_4, window_bounds = array<i64: 32, 16>}, {pipeline_mode = #tpu.pipeline_mode<synchronous>, transform_indices = @transform_5, window_bounds = array<i64: 16, 32>}, {pipeline_mode = #tpu.pipeline_mode<synchronous>, transform_indices = @transform_6, window_bounds = array<i64: 32, 96>}, {pipeline_mode = #tpu.pipeline_mode<synchronous>, transform_indices = @transform_7, window_bounds = array<i64: 1, 96>}, {transform_indices = @transform_8, window_bounds = array<i64: 8, 128>}]} {
    %c0 = arith.constant 0 : index
    %c0_0 = arith.constant 0 : index
    %0 = vector.load %arg1[%c0, %c0_0] : memref<8x32xf32, #tpu.memory_space<vmem>>, vector<8x32xf32>
    %c0_1 = arith.constant 0 : index
    %c0_2 = arith.constant 0 : index
    %1 = vector.load %arg2[%c0_1, %c0_2] : memref<8x32xf32, #tpu.memory_space<vmem>>, vector<8x32xf32>
    %c0_3 = arith.constant 0 : index
    %c0_4 = arith.constant 0 : index
    %2 = vector.load %arg4[%c0_3, %c0_4] : memref<32x16xf32, #tpu.memory_space<vmem>>, vector<32x16xf32>
    %cst = arith.constant dense<0.000000e+00> : vector<8x16xf32>
    %3 = tpu.matmul %0, %2, %cst {dimension_numbers = #tpu.dot_dimension_numbers<[1], [0], [0], [1], [0, 0, 1, 1], [], []>} : vector<8x32xf32>, vector<32x16xf32>, vector<8x16xf32> -> vector<8x16xf32>
    %c0_5 = arith.constant 0 : index
    %c0_6 = arith.constant 0 : index
    %4 = vector.load %arg5[%c0_5, %c0_6] : memref<32x16xf32, #tpu.memory_space<vmem>>, vector<32x16xf32>
    %cst_7 = arith.constant dense<0.000000e+00> : vector<8x16xf32>
    %5 = tpu.matmul %1, %4, %cst_7 {dimension_numbers = #tpu.dot_dimension_numbers<[1], [0], [0], [1], [0, 0, 1, 1], [], []>} : vector<8x32xf32>, vector<32x16xf32>, vector<8x16xf32> -> vector<8x16xf32>
    %6 = arith.addf %3, %5 : vector<8x16xf32>
    %c0_8 = arith.constant 0 : index
    %c0_9 = arith.constant 0 : index
    %7 = vector.load %arg3[%c0_8, %c0_9] : memref<32x32xf32, #tpu.memory_space<vmem>>, vector<32x32xf32>
    %cst_10 = arith.constant dense<0.000000e+00> : vector<8x32xf32>
    %8 = tpu.matmul %0, %7, %cst_10 {dimension_numbers = #tpu.dot_dimension_numbers<[1], [0], [0], [1], [0, 0, 1, 1], [], []>} : vector<8x32xf32>, vector<32x32xf32>, vector<8x32xf32> -> vector<8x32xf32>
    %c0_11 = arith.constant 0 : index
    %c0_12 = arith.constant 0 : index
    %9 = vector.load %arg6[%c0_11, %c0_12] : memref<16x32xf32, #tpu.memory_space<vmem>>, vector<16x32xf32>
    %cst_13 = arith.constant dense<0.000000e+00> : vector<8x32xf32>
    %10 = tpu.matmul %6, %9, %cst_13 {dimension_numbers = #tpu.dot_dimension_numbers<[1], [0], [0], [1], [0, 0, 1, 1], [], []>} : vector<8x16xf32>, vector<16x32xf32>, vector<8x32xf32> -> vector<8x32xf32>
    %11 = arith.addf %8, %10 : vector<8x32xf32>
    %12 = arith.subf %11, %0 : vector<8x32xf32>
    %c0_14 = arith.constant 0 : index
    %c0_15 = arith.constant 0 : index
    %13 = vector.load %arg7[%c0_14, %c0_15] : memref<32x96xf32, #tpu.memory_space<vmem>>, vector<32x96xf32>
    %cst_16 = arith.constant dense<0.000000e+00> : vector<8x96xf32>
    %14 = tpu.matmul %12, %13, %cst_16 {dimension_numbers = #tpu.dot_dimension_numbers<[1], [0], [0], [1], [0, 0, 1, 1], [], []>} : vector<8x32xf32>, vector<32x96xf32>, vector<8x96xf32> -> vector<8x96xf32>
    %c0_17 = arith.constant 0 : index
    %c0_18 = arith.constant 0 : index
    %15 = vector.load %arg8[%c0_17, %c0_18] : memref<1x96xf32, #tpu.memory_space<vmem>>, vector<1x96xf32>
    %16 = vector.broadcast %15 : vector<1x96xf32> to vector<8x96xf32>
    %17 = arith.addf %14, %16 : vector<8x96xf32>
    %18 = tpu.concatenate %11, %17 in 1 : vector<8x32xf32>, vector<8x96xf32> -> vector<8x128xf32>
    %c0_19 = arith.constant 0 : index
    %c0_20 = arith.constant 0 : index
    %19 = vector.load %arg9[%c0_19, %c0_20] : memref<8x128xf32, #tpu.memory_space<vmem>>, vector<8x128xf32>
    tpu.vector_store %arg9[%c0_19, %c0_20], %18 {strides = array<i32>} : memref<8x128xf32, #tpu.memory_space<vmem>>, vector<8x128xf32>,
    return
  }
  func.func @transform_0(%arg0: i32) -> (i32, i32) {
    %c0_i32 = arith.constant 0 : i32
    %c0_i32_0 = arith.constant 0 : i32
    return %arg0, %c0_i32 : i32, i32
  }
  func.func @transform_1(%arg0: i32) -> (i32, i32) {
    %c0_i32 = arith.constant 0 : i32
    %c0_i32_0 = arith.constant 0 : i32
    return %arg0, %c0_i32 : i32, i32
  }
  func.func @transform_2(%arg0: i32) -> (i32, i32) {
    %c0_i32 = arith.constant 0 : i32
    %c0_i32_0 = arith.constant 0 : i32
    %c0_i32_1 = arith.constant 0 : i32
    return %c0_i32, %c0_i32_0 : i32, i32
  }
  func.func @transform_3(%arg0: i32) -> (i32, i32) {
    %c0_i32 = arith.constant 0 : i32
    %c0_i32_0 = arith.constant 0 : i32
    %c0_i32_1 = arith.constant 0 : i32
    return %c0_i32, %c0_i32_0 : i32, i32
  }
  func.func @transform_4(%arg0: i32) -> (i32, i32) {
    %c0_i32 = arith.constant 0 : i32
    %c0_i32_0 = arith.constant 0 : i32
    %c0_i32_1 = arith.constant 0 : i32
    return %c0_i32, %c0_i32_0 : i32, i32
  }
  func.func @transform_5(%arg0: i32) -> (i32, i32) {
    %c0_i32 = arith.constant 0 : i32
    %c0_i32_0 = arith.constant 0 : i32
    %c0_i32_1 = arith.constant 0 : i32
    return %c0_i32, %c0_i32_0 : i32, i32
  }
  func.func @transform_6(%arg0: i32) -> (i32, i32) {
    %c0_i32 = arith.constant 0 : i32
    %c0_i32_0 = arith.constant 0 : i32
    %c0_i32_1 = arith.constant 0 : i32
    return %c0_i32, %c0_i32_0 : i32, i32
  }
  func.func @transform_7(%arg0: i32) -> (i32, i32) {
    %c0_i32 = arith.constant 0 : i32
    %c0_i32_0 = arith.constant 0 : i32
    %c0_i32_1 = arith.constant 0 : i32
    return %c0_i32, %c0_i32_0 : i32, i32
  }
  func.func @transform_8(%arg0: i32) -> (i32, i32) {
    %c0_i32 = arith.constant 0 : i32
    %c0_i32_0 = arith.constant 0 : i32
    return %arg0, %c0_i32 : i32, i32
  }
}

</mosaic_0001>

<llo_original>
// kernel: tpu_custom_call.1
$region0: #{tpu_custom_call.1}
  #allocation0 [shape = 'u32[]', space=smem, size = 0x4, offset = 0x4, fixed_abs, tag = 'smem constant byte address 0x4 - core index']
  #allocation1 [shape = 'u32[144,128]{1,0:T(1,128)}', space=vmem, size = 0x12000, scoped, tag = 'internal scratch']
  %s0 = inlined_call_operand.hbm [shape: f32[8,32], index: 0, kind: input, shape index: {}]
  %s1 = inlined_call_operand.hbm [shape: f32[8,32], index: 1, kind: input, shape index: {}]
  %s2 = inlined_call_operand.vmem [shape: f32[32,32], index: 2, kind: input, shape index: {}]
  %s3 = inlined_call_operand.vmem [shape: f32[32,16], index: 3, kind: input, shape index: {}]
  %s4 = inlined_call_operand.vmem [shape: f32[32,16], index: 4, kind: input, shape index: {}]
  %s5 = inlined_call_operand.vmem [shape: f32[16,32], index: 5, kind: input, shape index: {}]
  %s6 = inlined_call_operand.vmem [shape: f32[32,96], index: 6, kind: input, shape index: {}]
  %s7 = inlined_call_operand.vmem [shape: f32[1,96], index: 7, kind: input, shape index: {}]
  %s8 = inlined_call_operand.hbm [shape: f32[8,128], index: 8, kind: output, shape index: {}]
  %s9 = sld [smem:[#allocation0]]
  $region50: #{tpu_custom_call.1} parent=0
    _
  %s11 = ssub.s32 1, %s9
  %s12 = scalar_select 0, %s11, %s9
  $region1: #{tpu_custom_call.1} parent=0
    #allocation2 [shape = 'u8[4096]{0}', space=vmem, size = 0x1000, scoped, tag = 'input window, operand 0, single buffered']
    #allocation3 [shape = 's32[1]{0}', space=sflag, size = 0x4, scoped, tag = 'scoped memory for tpu_custom_call.1']
    #allocation4 [shape = 's32[1]{0}', space=sflag, size = 0x4, scoped, tag = 'scoped memory for tpu_custom_call.1']
    #allocation5 [shape = 'u8[4096]{0}', space=vmem, size = 0x1000, scoped, tag = 'input window, operand 1, single buffered']
    #allocation6 [shape = 's32[1]{0}', space=sflag, size = 0x4, scoped, tag = 'scoped memory for tpu_custom_call.1']
    #allocation7 [shape = 'u8[4096]{0}', space=vmem, size = 0x1000, scoped, tag = 'output window, operand 0, single buffered']
    %13 = vsyncpa [#allocation3], 0
    %14 = vsyncpa [#allocation6], 0
    %15 = vsyncpa [#allocation4], 0
    // Predicated region
    $region2: #{tpu_custom_call.1} parent=1 // pred_check
      _
    $region3: #{tpu_custom_call.1} parent=1 // pred_check_branch
      %17 = sbr.rel (0) target = $region5
    $region4: #{tpu_custom_call.1} parent=1 // pred_region
      %s19 = ssub.s32 128, 128
      %20 = vsyncadd [#allocation3], %s19
      %s22 = sshll.u32 [#allocation2], 4
      %s23 = int_to_ptr.vmem [resolvable:$true] %s22
      %25 = dma.hbm_to_vmem [thread:$0]  %s0, 128, %s23, [#allocation3]
    $region5: #{tpu_custom_call.1} parent=1 // pred_fallthru
      _
    // Predicated region
    $region6: #{tpu_custom_call.1} parent=1 // pred_check
      _
    $region7: #{tpu_custom_call.1} parent=1 // pred_check_branch
      %27 = sbr.rel (0) target = $region9
    $region8: #{tpu_custom_call.1} parent=1 // pred_region
      %s29 = ssub.s32 128, 128
      %30 = vsyncadd [#allocation6], %s29
      %s32 = sshll.u32 [#allocation5], 4
      %s33 = int_to_ptr.vmem [resolvable:$true] %s32
      %35 = dma.hbm_to_vmem [thread:$0]  %s1, 128, %s33, [#allocation6]
    $region9: #{tpu_custom_call.1} parent=1 // pred_fallthru
      _
    // Predicated region
    $region10: #{tpu_custom_call.1} parent=1 // pred_check
      _
    $region11: #{tpu_custom_call.1} parent=1 // pred_check_branch
      %37 = sbr.rel (0) target = $region13
    $region12: #{tpu_custom_call.1} parent=1 // pred_region
      _
    $region13: #{tpu_custom_call.1} parent=1 // pred_fallthru
      _
    // Predicated region
    $region14: #{tpu_custom_call.1} parent=1 // pred_check
      _
    $region15: #{tpu_custom_call.1} parent=1 // pred_check_branch
      %39 = sbr.rel (0) target = $region17
    $region16: #{tpu_custom_call.1} parent=1 // pred_region
      _
    $region17: #{tpu_custom_call.1} parent=1 // pred_fallthru
      _
    // Predicated region
    $region18: #{tpu_custom_call.1} parent=1 // pred_check
      _
    $region19: #{tpu_custom_call.1} parent=1 // pred_check_branch
      %41 = sbr.rel (0) target = $region21
    $region20: #{tpu_custom_call.1} parent=1 // pred_region
      _
    $region21: #{tpu_custom_call.1} parent=1 // pred_fallthru
      _
    // Predicated region
    $region22: #{tpu_custom_call.1} parent=1 // pred_check
      _
    $region23: #{tpu_custom_call.1} parent=1 // pred_check_branch
      %43 = sbr.rel (0) target = $region25
    $region24: #{tpu_custom_call.1} parent=1 // pred_region
      _
    $region25: #{tpu_custom_call.1} parent=1 // pred_fallthru
      _
    // Predicated region
    $region26: #{tpu_custom_call.1} parent=1 // pred_check
      _
    $region27: #{tpu_custom_call.1} parent=1 // pred_check_branch
      %45 = sbr.rel (0) target = $region29
    $region28: #{tpu_custom_call.1} parent=1 // pred_region
      _
    $region29: #{tpu_custom_call.1} parent=1 // pred_fallthru
      _
    // Predicated region
    $region30: #{tpu_custom_call.1} parent=1 // pred_check
      _
    $region31: #{tpu_custom_call.1} parent=1 // pred_check_branch
      %47 = sbr.rel (0) target = $region33
    $region32: #{tpu_custom_call.1} parent=1 // pred_region
      _
    $region33: #{tpu_custom_call.1} parent=1 // pred_fallthru
      _
    // Predicated region
    $region34: #{tpu_custom_call.1} parent=1 // pred_check
      _
    $region35: #{tpu_custom_call.1} parent=1 // pred_check_branch
      %49 = sbr.rel (0) target = $region37
    $region36: #{tpu_custom_call.1} parent=1 // pred_region
      %50 = dma.done [#allocation3], 128
    $region37: #{tpu_custom_call.1} parent=1 // pred_fallthru
      _
    // Predicated region
    $region38: #{tpu_custom_call.1} parent=1 // pred_check
      _
    $region39: #{tpu_custom_call.1} parent=1 // pred_check_branch
      %52 = sbr.rel (0) target = $region41
    $region40: #{tpu_custom_call.1} parent=1 // pred_region
      %53 = dma.done [#allocation6], 128
    $region41: #{tpu_custom_call.1} parent=1 // pred_fallthru
      _
    %v54 = vld [vmem:[#allocation2] sm:$0xff]
    %v55 = vld [vmem:[#allocation5] sm:$0xff]
    %v56 = vld [vmem:[%s3] sm:$0xff]
    %v57 = vld [vmem:[%s3 + $0x8] sm:$0xff]
    %v58 = vld [vmem:[%s3 + $0x10] sm:$0xff]
    %v59 = vld [vmem:[%s3 + $0x18] sm:$0xff]
    %v60 = vld [vmem:[%s4] sm:$0xff]
    %v61 = vld [vmem:[%s4 + $0x8] sm:$0xff]
    %v62 = vld [vmem:[%s4 + $0x10] sm:$0xff]
    %v63 = vld [vmem:[%s4 + $0x18] sm:$0xff]
    %vm64 = vcmask 261120
    %v66 = vsel %vm64, %v55, 0
    %68 = vmatprep.subr.mxu0 0.0
    %69 = vmatpush1.msra.mxu0 %v60
    %70 = vmatprep.subr.mxu0 0.0
    %71 = vmatpush1.msra.mxu0 %v61
    %72 = vmatprep.subr.mxu0 0.0
    %73 = vmatpush1.msra.mxu0 %v62
    %74 = vmatprep.subr.mxu0 0.0
    %75 = vmatpush1.msra.mxu0 %v63
    %76 = vmatprep.subr.mxu0 0.0
    %77 = vmatpush1.msra.mxu0 0.0
    %78 = vmatprep.subr.mxu0 0.0
    %79 = vmatpush1.msra.mxu0 0.0
    %80 = vmatprep.subr.mxu0 0.0
    %81 = vmatpush1.msra.mxu0 0.0
    %82 = vmatprep.subr.mxu0 0.0
    %83 = vmatpush1.msra.mxu0 0.0
    %84 = vmatprep.subr.mxu0 0.0
    %85 = vmatpush1.msra.mxu0 0.0
    %86 = vmatprep.subr.mxu0 0.0
    %87 = vmatpush1.msra.mxu0 0.0
    %88 = vmatprep.subr.mxu0 0.0
    %89 = vmatpush1.msra.mxu0 0.0
    %90 = vmatprep.subr.mxu0 0.0
    %91 = vmatpush1.msra.mxu0 0.0
    %92 = vmatprep.subr.mxu0 0.0
    %93 = vmatpush1.msra.mxu0 0.0
    %94 = vmatprep.subr.mxu0 0.0
    %95 = vmatpush1.msra.mxu0 0.0
    %96 = vmatprep.subr.mxu0 0.0
    %97 = vmatpush1.msra.mxu0 0.0
    %98 = vmatprep.subr.mxu0 0.0
    %99 = vmatpush1.msra.mxu0 0.0
    %100 = vmatprep.subr.mxu0 0.0
    %101 = vmatpush1.msra.mxu0 0.0
    %102 = vmatprep.subr.mxu0 0.0
    %103 = vmatpush1.msra.mxu0 0.0
    %104 = vmatprep.subr.mxu0 0.0
    %105 = vmatpush1.msra.mxu0 0.0
    %106 = vmatprep.subr.mxu0 0.0
    %107 = vmatpush1.msra.mxu0 0.0
    %108 = vmatprep.subr.mxu0 0.0
    %109 = vmatpush1.msra.mxu0 0.0
    %110 = vmatprep.subr.mxu0 0.0
    %111 = vmatpush1.msra.mxu0 0.0
    %112 = vmatprep.subr.mxu0 0.0
    %113 = vmatpush1.msra.mxu0 0.0
    %114 = vmatprep.subr.mxu0 0.0
    %115 = vmatpush1.msra.mxu0 0.0
    %116 = vmatprep.subr.mxu0 0.0
    %117 = vmatpush1.msra.mxu0 0.0
    %118 = vmatprep.subr.mxu0 0.0
    %119 = vmatpush1.msra.mxu0 0.0
    %120 = vmatprep.subr.mxu0 0.0
    %121 = vmatpush1.msra.mxu0 0.0
    %122 = vmatprep.subr.mxu0 0.0
    %123 = vmatpush1.msra.mxu0 0.0
    %124 = vmatprep.subr.mxu0 0.0
    %125 = vmatpush1.msra.mxu0 0.0
    %126 = vmatprep.subr.mxu0 0.0
    %127 = vmatpush1.msra.mxu0 0.0
    %128 = vmatprep.subr.mxu0 0.0
    %129 = vmatpush1.msra.mxu0 0.0
    %130 = vmatprep.subr.mxu0 0.0
    %131 = vmatpush1.msra.mxu0 0.0
    %132 = vmatprep.mubr.f32.mxu0 0.0
    %133 = vmatmul.mubr.f32.gmra.mrb[0].mxu0 %v66
    %v134 = vpop.f32.mrb[0].mxu0
    %v135 = vadd.f32 0.0, %v134
    %v136 = vpop.f32.mrb[0].mxu0
    %137 = vdwg.mxu0
    %v139 = vsel %vm64, %v54, 0
    %141 = vmatprep.subr.mxu0 0.0
    %142 = vmatpush1.msra.mxu0 %v56
    %143 = vmatprep.subr.mxu0 0.0
    %144 = vmatpush1.msra.mxu0 %v57
    %145 = vmatprep.subr.mxu0 0.0
    %146 = vmatpush1.msra.mxu0 %v58
    %147 = vmatprep.subr.mxu0 0.0
    %148 = vmatpush1.msra.mxu0 %v59
    %149 = vmatprep.subr.mxu0 0.0
    %150 = vmatpush1.msra.mxu0 0.0
    %151 = vmatprep.subr.mxu0 0.0
    %152 = vmatpush1.msra.mxu0 0.0
    %153 = vmatprep.subr.mxu0 0.0
    %154 = vmatpush1.msra.mxu0 0.0
    %155 = vmatprep.subr.mxu0 0.0
    %156 = vmatpush1.msra.mxu0 0.0
    %157 = vmatprep.subr.mxu0 0.0
    %158 = vmatpush1.msra.mxu0 0.0
    %159 = vmatprep.subr.mxu0 0.0
    %160 = vmatpush1.msra.mxu0 0.0
    %161 = vmatprep.subr.mxu0 0.0
    %162 = vmatpush1.msra.mxu0 0.0
    %163 = vmatprep.subr.mxu0 0.0
    %164 = vmatpush1.msra.mxu0 0.0
    %165 = vmatprep.subr.mxu0 0.0
    %166 = vmatpush1.msra.mxu0 0.0
    %167 = vmatprep.subr.mxu0 0.0
    %168 = vmatpush1.msra.mxu0 0.0
    %169 = vmatprep.subr.mxu0 0.0
    %170 = vmatpush1.msra.mxu0 0.0
    %171 = vmatprep.subr.mxu0 0.0
    %172 = vmatpush1.msra.mxu0 0.0
    %173 = vmatprep.subr.mxu0 0.0
    %174 = vmatpush1.msra.mxu0 0.0
    %175 = vmatprep.subr.mxu0 0.0
    %176 = vmatpush1.msra.mxu0 0.0
    %177 = vmatprep.subr.mxu0 0.0
    %178 = vmatpush1.msra.mxu0 0.0
    %179 = vmatprep.subr.mxu0 0.0
    %180 = vmatpush1.msra.mxu0 0.0
    %181 = vmatprep.subr.mxu0 0.0
    %182 = vmatpush1.msra.mxu0 0.0
    %183 = vmatprep.subr.mxu0 0.0
    %184 = vmatpush1.msra.mxu0 0.0
    %185 = vmatprep.subr.mxu0 0.0
    %186 = vmatpush1.msra.mxu0 0.0
    %187 = vmatprep.subr.mxu0 0.0
    %188 = vmatpush1.msra.mxu0 0.0
    %189 = vmatprep.subr.mxu0 0.0
    %190 = vmatpush1.msra.mxu0 0.0
    %191 = vmatprep.subr.mxu0 0.0
    %192 = vmatpush1.msra.mxu0 0.0
    %193 = vmatprep.subr.mxu0 0.0
    %194 = vmatpush1.msra.mxu0 0.0
    %195 = vmatprep.subr.mxu0 0.0
    %196 = vmatpush1.msra.mxu0 0.0
    %197 = vmatprep.subr.mxu0 0.0
    %198 = vmatpush1.msra.mxu0 0.0
    %199 = vmatprep.subr.mxu0 0.0
    %200 = vmatpush1.msra.mxu0 0.0
    %201 = vmatprep.subr.mxu0 0.0
    %202 = vmatpush1.msra.mxu0 0.0
    %203 = vmatprep.subr.mxu0 0.0
    %204 = vmatpush1.msra.mxu0 0.0
    %205 = vmatprep.mubr.f32.mxu0 0.0
    %206 = vmatmul.mubr.f32.gmra.mrb[0].mxu0 %v139
    %v207 = vpop.f32.mrb[0].mxu0
    %v208 = vadd.f32 %v135, %v207
    %v209 = vpop.f32.mrb[0].mxu0
    %210 = vdwg.mxu0
    %v211 = vld [vmem:[%s2] sm:$0xff]
    %v212 = vld [vmem:[%s2 + $0x8] sm:$0xff]
    %v213 = vld [vmem:[%s2 + $0x10] sm:$0xff]
    %v214 = vld [vmem:[%s2 + $0x18] sm:$0xff]
    %v215 = vld [vmem:[%s5] sm:$0xff]
    %v216 = vld [vmem:[%s5 + $0x8] sm:$0xff]
    %vm217 = vcmask 130048
    %v219 = vsel %vm217, %v208, 0
    %221 = vmatprep.subr.mxu0 0.0
    %222 = vmatpush1.msra.mxu0 %v215
    %223 = vmatprep.subr.mxu0 0.0
    %224 = vmatpush1.msra.mxu0 %v216
    %225 = vmatprep.subr.mxu0 0.0
    %226 = vmatpush1.msra.mxu0 0.0
    %227 = vmatprep.subr.mxu0 0.0
    %228 = vmatpush1.msra.mxu0 0.0
    %229 = vmatprep.subr.mxu0 0.0
    %230 = vmatpush1.msra.mxu0 0.0
    %231 = vmatprep.subr.mxu0 0.0
    %232 = vmatpush1.msra.mxu0 0.0
    %233 = vmatprep.subr.mxu0 0.0
    %234 = vmatpush1.msra.mxu0 0.0
    %235 = vmatprep.subr.mxu0 0.0
    %236 = vmatpush1.msra.mxu0 0.0
    %237 = vmatprep.subr.mxu0 0.0
    %238 = vmatpush1.msra.mxu0 0.0
    %239 = vmatprep.subr.mxu0 0.0
    %240 = vmatpush1.msra.mxu0 0.0
    %241 = vmatprep.subr.mxu0 0.0
    %242 = vmatpush1.msra.mxu0 0.0
    %243 = vmatprep.subr.mxu0 0.0
    %244 = vmatpush1.msra.mxu0 0.0
    %245 = vmatprep.subr.mxu0 0.0
    %246 = vmatpush1.msra.mxu0 0.0
    %247 = vmatprep.subr.mxu0 0.0
    %248 = vmatpush1.msra.mxu0 0.0
    %249 = vmatprep.subr.mxu0 0.0
    %250 = vmatpush1.msra.mxu0 0.0
    %251 = vmatprep.subr.mxu0 0.0
    %252 = vmatpush1.msra.mxu0 0.0
    %253 = vmatprep.subr.mxu0 0.0
    %254 = vmatpush1.msra.mxu0 0.0
    %255 = vmatprep.subr.mxu0 0.0
    %256 = vmatpush1.msra.mxu0 0.0
    %257 = vmatprep.subr.mxu0 0.0
    %258 = vmatpush1.msra.mxu0 0.0
    %259 = vmatprep.subr.mxu0 0.0
    %260 = vmatpush1.msra.mxu0 0.0
    %261 = vmatprep.subr.mxu0 0.0
    %262 = vmatpush1.msra.mxu0 0.0
    %263 = vmatprep.subr.mxu0 0.0
    %264 = vmatpush1.msra.mxu0 0.0
    %265 = vmatprep.subr.mxu0 0.0
    %266 = vmatpush1.msra.mxu0 0.0
    %267 = vmatprep.subr.mxu0 0.0
    %268 = vmatpush1.msra.mxu0 0.0
    %269 = vmatprep.subr.mxu0 0.0
    %270 = vmatpush1.msra.mxu0 0.0
    %271 = vmatprep.subr.mxu0 0.0
    %272 = vmatpush1.msra.mxu0 0.0
    %273 = vmatprep.subr.mxu0 0.0
    %274 = vmatpush1.msra.mxu0 0.0
    %275 = vmatprep.subr.mxu0 0.0
    %276 = vmatpush1.msra.mxu0 0.0
    %277 = vmatprep.subr.mxu0 0.0
    %278 = vmatpush1.msra.mxu0 0.0
    %279 = vmatprep.subr.mxu0 0.0
    %280 = vmatpush1.msra.mxu0 0.0
    %281 = vmatprep.subr.mxu0 0.0
    %282 = vmatpush1.msra.mxu0 0.0
    %283 = vmatprep.subr.mxu0 0.0
    %284 = vmatpush1.msra.mxu0 0.0
    %285 = vmatprep.mubr.f32.mxu0 0.0
    %286 = vmatmul.mubr.f32.gmra.mrb[0].mxu0 %v219
    %v287 = vpop.f32.mrb[0].mxu0
    %v288 = vadd.f32 0.0, %v287
    %v289 = vpop.f32.mrb[0].mxu0
    %290 = vdwg.mxu0
    %291 = vmatprep.subr.mxu0 0.0
    %292 = vmatpush1.msra.mxu0 %v211
    %293 = vmatprep.subr.mxu0 0.0
    %294 = vmatpush1.msra.mxu0 %v212
    %295 = vmatprep.subr.mxu0 0.0
    %296 = vmatpush1.msra.mxu0 %v213
    %297 = vmatprep.subr.mxu0 0.0
    %298 = vmatpush1.msra.mxu0 %v214
    %299 = vmatprep.subr.mxu0 0.0
    %300 = vmatpush1.msra.mxu0 0.0
    %301 = vmatprep.subr.mxu0 0.0
    %302 = vmatpush1.msra.mxu0 0.0
    %303 = vmatprep.subr.mxu0 0.0
    %304 = vmatpush1.msra.mxu0 0.0
    %305 = vmatprep.subr.mxu0 0.0
    %306 = vmatpush1.msra.mxu0 0.0
    %307 = vmatprep.subr.mxu0 0.0
    %308 = vmatpush1.msra.mxu0 0.0
    %309 = vmatprep.subr.mxu0 0.0
    %310 = vmatpush1.msra.mxu0 0.0
    %311 = vmatprep.subr.mxu0 0.0
    %312 = vmatpush1.msra.mxu0 0.0
    %313 = vmatprep.subr.mxu0 0.0
    %314 = vmatpush1.msra.mxu0 0.0
    %315 = vmatprep.subr.mxu0 0.0
    %316 = vmatpush1.msra.mxu0 0.0
    %317 = vmatprep.subr.mxu0 0.0
    %318 = vmatpush1.msra.mxu0 0.0
    %319 = vmatprep.subr.mxu0 0.0
    %320 = vmatpush1.msra.mxu0 0.0
    %321 = vmatprep.subr.mxu0 0.0
    %322 = vmatpush1.msra.mxu0 0.0
    %323 = vmatprep.subr.mxu0 0.0
    %324 = vmatpush1.msra.mxu0 0.0
    %325 = vmatprep.subr.mxu0 0.0
    %326 = vmatpush1.msra.mxu0 0.0
    %327 = vmatprep.subr.mxu0 0.0
    %328 = vmatpush1.msra.mxu0 0.0
    %329 = vmatprep.subr.mxu0 0.0
    %330 = vmatpush1.msra.mxu0 0.0
    %331 = vmatprep.subr.mxu0 0.0
    %332 = vmatpush1.msra.mxu0 0.0
    %333 = vmatprep.subr.mxu0 0.0
    %334 = vmatpush1.msra.mxu0 0.0
    %335 = vmatprep.subr.mxu0 0.0
    %336 = vmatpush1.msra.mxu0 0.0
    %337 = vmatprep.subr.mxu0 0.0
    %338 = vmatpush1.msra.mxu0 0.0
    %339 = vmatprep.subr.mxu0 0.0
    %340 = vmatpush1.msra.mxu0 0.0
    %341 = vmatprep.subr.mxu0 0.0
    %342 = vmatpush1.msra.mxu0 0.0
    %343 = vmatprep.subr.mxu0 0.0
    %344 = vmatpush1.msra.mxu0 0.0
    %345 = vmatprep.subr.mxu0 0.0
    %346 = vmatpush1.msra.mxu0 0.0
    %347 = vmatprep.subr.mxu0 0.0
    %348 = vmatpush1.msra.mxu0 0.0
    %349 = vmatprep.subr.mxu0 0.0
    %350 = vmatpush1.msra.mxu0 0.0
    %351 = vmatprep.subr.mxu0 0.0
    %352 = vmatpush1.msra.mxu0 0.0
    %353 = vmatprep.subr.mxu0 0.0
    %354 = vmatpush1.msra.mxu0 0.0
    %355 = vmatprep.mubr.f32.mxu0 0.0
    %356 = vmatmul.mubr.f32.gmra.mrb[0].mxu0 %v139
    %v357 = vpop.f32.mrb[0].mxu0
    %v358 = vadd.f32 %v288, %v357
    %v359 = vpop.f32.mrb[0].mxu0
    %360 = vdwg.mxu0
    %v361 = vsub.f32 %v358, %v54
    %v362 = vld [vmem:[%s6] sm:$0xff]
    %v363 = vld [vmem:[%s6 + $0x8] sm:$0xff]
    %v364 = vld [vmem:[%s6 + $0x10] sm:$0xff]
    %v365 = vld [vmem:[%s6 + $0x18] sm:$0xff]
    %v366 = vld [vmem:[%s7] sm:$0x1]
    %v368 = vlaneseq
    %v369 = vshrl.u32 %v368, 7
    %v370 = vsub.s32 0, %v369
    %v371 = vrot.slane %v366, %v370
    %v374 = vsel %vm64, %v361, 0
    %376 = vmatprep.subr.mxu0 0.0
    %377 = vmatpush1.msra.mxu0 %v362
    %378 = vmatprep.subr.mxu0 0.0
    %379 = vmatpush1.msra.mxu0 %v363
    %380 = vmatprep.subr.mxu0 0.0
    %381 = vmatpush1.msra.mxu0 %v364
    %382 = vmatprep.subr.mxu0 0.0
    %383 = vmatpush1.msra.mxu0 %v365
    %384 = vmatprep.subr.mxu0 0.0
    %385 = vmatpush1.msra.mxu0 0.0
    %386 = vmatprep.subr.mxu0 0.0
    %387 = vmatpush1.msra.mxu0 0.0
    %388 = vmatprep.subr.mxu0 0.0
    %389 = vmatpush1.msra.mxu0 0.0
    %390 = vmatprep.subr.mxu0 0.0
    %391 = vmatpush1.msra.mxu0 0.0
    %392 = vmatprep.subr.mxu0 0.0
    %393 = vmatpush1.msra.mxu0 0.0
    %394 = vmatprep.subr.mxu0 0.0
    %395 = vmatpush1.msra.mxu0 0.0
    %396 = vmatprep.subr.mxu0 0.0
    %397 = vmatpush1.msra.mxu0 0.0
    %398 = vmatprep.subr.mxu0 0.0
    %399 = vmatpush1.msra.mxu0 0.0
    %400 = vmatprep.subr.mxu0 0.0
    %401 = vmatpush1.msra.mxu0 0.0
    %402 = vmatprep.subr.mxu0 0.0
    %403 = vmatpush1.msra.mxu0 0.0
    %404 = vmatprep.subr.mxu0 0.0
    %405 = vmatpush1.msra.mxu0 0.0
    %406 = vmatprep.subr.mxu0 0.0
    %407 = vmatpush1.msra.mxu0 0.0
    %408 = vmatprep.subr.mxu0 0.0
    %409 = vmatpush1.msra.mxu0 0.0
    %410 = vmatprep.subr.mxu0 0.0
    %411 = vmatpush1.msra.mxu0 0.0
    %412 = vmatprep.subr.mxu0 0.0
    %413 = vmatpush1.msra.mxu0 0.0
    %414 = vmatprep.subr.mxu0 0.0
    %415 = vmatpush1.msra.mxu0 0.0
    %416 = vmatprep.subr.mxu0 0.0
    %417 = vmatpush1.msra.mxu0 0.0
    %418 = vmatprep.subr.mxu0 0.0
    %419 = vmatpush1.msra.mxu0 0.0
    %420 = vmatprep.subr.mxu0 0.0
    %421 = vmatpush1.msra.mxu0 0.0
    %422 = vmatprep.subr.mxu0 0.0
    %423 = vmatpush1.msra.mxu0 0.0
    %424 = vmatprep.subr.mxu0 0.0
    %425 = vmatpush1.msra.mxu0 0.0
    %426 = vmatprep.subr.mxu0 0.0
    %427 = vmatpush1.msra.mxu0 0.0
    %428 = vmatprep.subr.mxu0 0.0
    %429 = vmatpush1.msra.mxu0 0.0
    %430 = vmatprep.subr.mxu0 0.0
    %431 = vmatpush1.msra.mxu0 0.0
    %432 = vmatprep.subr.mxu0 0.0
    %433 = vmatpush1.msra.mxu0 0.0
    %434 = vmatprep.subr.mxu0 0.0
    %435 = vmatpush1.msra.mxu0 0.0
    %436 = vmatprep.subr.mxu0 0.0
    %437 = vmatpush1.msra.mxu0 0.0
    %438 = vmatprep.subr.mxu0 0.0
    %439 = vmatpush1.msra.mxu0 0.0
    %440 = vmatprep.mubr.f32.mxu0 0.0
    %441 = vmatmul.mubr.f32.gmra.mrb[0].mxu0 %v374
    %v442 = vpop.f32.mrb[0].mxu0
    %v443 = vadd.f32 %v371, %v442
    %v444 = vpop.f32.mrb[0].mxu0
    %445 = vdwg.mxu0
    %447 = vrot.lane.b32.xlu0 %v443, 32
    %v448 = vpop.permute.xlu0 %447
    %v450 = vsel %vm64, %v358, %v448
    %451 = vst [vmem:[#allocation7] sm:$0xff] %v450
    // Predicated region
    $region42: #{tpu_custom_call.1} parent=1 // pred_check
      _
    $region43: #{tpu_custom_call.1} parent=1 // pred_check_branch
      %453 = sbr.rel (0) target = $region45
    $region44: #{tpu_custom_call.1} parent=1 // pred_region
      %s455 = ssub.s32 128, 128
      %456 = vsyncadd [#allocation4], %s455
      %s458 = sshll.u32 [#allocation7], 4
      %s459 = int_to_ptr.vmem [resolvable:$true] %s458
      %461 = dma.vmem_to_hbm [thread:$0]  %s459, 128, %s8, [#allocation4]
    $region45: #{tpu_custom_call.1} parent=1 // pred_fallthru
      _
    // Predicated region
    $region46: #{tpu_custom_call.1} parent=1 // pred_check
      _
    $region47: #{tpu_custom_call.1} parent=1 // pred_check_branch
      %463 = sbr.rel (0) target = $region49
    $region48: #{tpu_custom_call.1} parent=1 // pred_region
      %464 = dma.done [#allocation4], 128
    $region49: #{tpu_custom_call.1} parent=1 // pred_fallthru
      _
    %465 = vsyncpa [#allocation3], 1
    %466 = vsyncpa [#allocation6], 1
    %467 = vsyncpa [#allocation4], 1

</llo_original>
